<compile_context>
chip_gen: v6e
topology: v6e:2x2x1
jax: 0.10.0
libtpu: 0.0.40
codegen_flags: <defaults>
</compile_context>

<pallas_src>
import functools

import jax
import jax.numpy as jnp
from jax import lax
from jax.experimental import pallas as pl
from jax.experimental.pallas import tpu as pltpu

_LANE = 128      # vreg lane width (fast axis)
_ACC_ROWS = 32   # accumulator rows: 4 independent (8, 128) stripes


def _round_up(x, m):
    return ((x + m - 1) // m) * m


@functools.lru_cache(maxsize=1)
def _auto_tune():
    """Per-chip (max_block_rows, num_parallel, vmem_limit_bytes)."""
    max_block_rows, num_parallel, vmem_limit = 4096, 1, None
    # Block size: bigger blocks amortize the ~0.35us per-grid-step cost; the
    # bound is scoped VMEM (2 inputs x 2 pipeline buffers x block bytes).
    try:
        info = pltpu.get_tpu_info()
        vmem_cap = int(getattr(info, "vmem_capacity_bytes", 0) or 0)
    except Exception:
        vmem_cap = 0
    if vmem_cap >= 100 * 1024 * 1024:
        # v5e / v6e class: 128 MiB physical VMEM.
        max_block_rows = 16384            # 8 MiB/block/input -> 32 MiB double-buffered
        vmem_limit = 64 * 1024 * 1024
    elif vmem_cap > 0:
        # v7x class: 64 MiB physical VMEM -> stay within a 32 MiB scoped limit.
        max_block_rows = 8192             # 4 MiB/block/input -> 16 MiB double-buffered
        vmem_limit = 32 * 1024 * 1024
    # Parallel grid-axis width = TensorCores per device (2 on v4/v5p megacore
    # and v7x, 1 on v5e/v6e).  Default to 1 when unknown (always safe).
    try:
        kind = jax.devices()[0].device_kind.lower()
    except Exception:
        kind = ""
    if any(tag in kind for tag in ("v4", "v5p", "v7", "7x")):
        num_parallel = 2
    return max_block_rows, num_parallel, vmem_limit


def _make_kernel(block_rows, rows_valid, needs_mask):
    """Streaming sum-of-squared-differences kernel for one (p, n_tiles) grid."""
    n_fold = block_rows // _ACC_ROWS

    def kernel(h_ref, c_ref, out_ref, acc_ref):
        t = pl.program_id(1)

        @pl.when(t == 0)
        def _init():
            acc_ref[...] = jnp.zeros_like(acc_ref)

        d = h_ref[...].astype(jnp.float32) - c_ref[...].astype(jnp.float32)
        sq = d * d
        if needs_mask:
            # The last linear block overhangs the array; rows past `rows_valid`
            # contain unspecified (implicitly padded) data -> zero them out.
            linear_block = pl.program_id(0) * pl.num_programs(1) + t
            row_ids = linear_block * block_rows + lax.broadcasted_iota(
                jnp.int32, (block_rows, _LANE), 0)
            sq = jnp.where(row_ids < rows_valid, sq, 0.0)

        # Fold the block into 4 independent (8, 128) accumulator stripes:
        # short, parallel VPU add chains; no XLU work in the steady state.
        acc_ref[...] += jnp.sum(sq.reshape(n_fold, _ACC_ROWS, _LANE), axis=0)

        @pl.when(t == pl.num_programs(1) - 1)
        def _finalize():
            out_ref[0, 0] = jnp.sum(acc_ref[...])

    return kernel


def hash_center_loss(original_hash, hash_center, *, max_block_rows=None,
                     num_parallel=None, vmem_limit_bytes=None):
    """Pallas equivalent of Loss.forward; returns a scalar float32."""
    assert original_hash.shape == hash_center.shape
    total = int(original_hash.size)
    assert total > 0
    scale = 0.25 / float(total)

    tuned_rows, tuned_p, tuned_vmem = _auto_tune()
    if max_block_rows is None:
        max_block_rows = tuned_rows
    if num_parallel is None:
        num_parallel = tuned_p
    if vmem_limit_bytes is None:
        vmem_limit_bytes = tuned_vmem
    max_block_rows = max(_ACC_ROWS, (int(max_block_rows) // _ACC_ROWS) * _ACC_ROWS)

    h = original_hash.reshape(-1)
    c = hash_center.reshape(-1)
    rows = -(-total // _LANE)  # ceil(total / 128)

    if rows <= max_block_rows:
        # Small problem: one block, one grid step.  Padding is cheap at this
        # size and lets the single block exactly cover the array.
        p, n_tiles = 1, 1
        block_rows = _round_up(rows, _ACC_ROWS)
        rows_padded = block_rows
        needs_mask = False
    else:
        p = max(1, int(num_parallel))
        n_linear = _round_up(max(-(-rows // max_block_rows), p), p)
        n_tiles = n_linear // p
        block_rows = _round_up(-(-rows // n_linear), _ACC_ROWS)
        if (n_linear - 1) * block_rows >= rows:
            # Rare unlucky shape: pad slightly so no block is fully
            # out-of-bounds (keeps every DMA useful); pad is <1% of rows.
            rows_padded = n_linear * block_rows
            needs_mask = False
        else:
            rows_padded = rows  # zero-copy path when total % 128 == 0
            needs_mask = (n_linear * block_rows) != rows_padded

    pad_elems = rows_padded * _LANE - total
    if pad_elems:
        # Zero padding: (0 - 0)^2 contributes nothing to the sum.  On the
        # large-input path this is at most 127 elements (lane alignment).
        h = jnp.pad(h, (0, pad_elems))
        c = jnp.pad(c, (0, pad_elems))
    h2 = h.reshape(rows_padded, _LANE)
    c2 = c.reshape(rows_padded, _LANE)

    in_map = lambda pi, ti: (pi * n_tiles + ti, 0)
    kernel = _make_kernel(block_rows, rows_padded, needs_mask)

    partials = pl.pallas_call(
        kernel,
        out_shape=jax.ShapeDtypeStruct((p, 1), jnp.float32),
        grid_spec=pltpu.PrefetchScalarGridSpec(
            num_scalar_prefetch=0,
            grid=(p, n_tiles),
            in_specs=[
                pl.BlockSpec((block_rows, _LANE), in_map),
                pl.BlockSpec((block_rows, _LANE), in_map),
            ],
            out_specs=pl.BlockSpec(
                (1, 1), lambda pi, ti: (pi, 0), memory_space=pltpu.SMEM
            ),
            scratch_shapes=[pltpu.VMEM((_ACC_ROWS, _LANE), jnp.float32)],
        ),
        compiler_params=pltpu.CompilerParams(
            dimension_semantics=("parallel", "arbitrary"),
            vmem_limit_bytes=vmem_limit_bytes,
        ),
    )(h2, c2)

    return jnp.sum(partials) * jnp.float32(scale)


if __name__ == "__main__":
    code_length = 32
    batch = 16

    key = jax.random.PRNGKey(0)
    k1, k2, k3, k4, k5, k6 = jax.random.split(key, 6)

    def ref_loss(hh, cc):
        return jnp.mean((0.5 * (hh + 1.0) - 0.5 * (cc + 1.0)) ** 2)

    # 1) Production-like tiny shape (single-block path, auto-tuned).
    original_hash = jnp.tanh(jax.random.normal(k1, (batch, code_length), jnp.float32))
    hash_center = jnp.sign(jax.random.normal(k2, (batch, code_length), jnp.float32))
    loss = jax.block_until_ready(hash_center_loss(original_hash, hash_center))
    assert jnp.allclose(loss, ref_loss(original_hash, hash_center),
                        rtol=1e-5, atol=1e-6), loss

    # 2) 128-aligned larger input: exercises the zero-copy multi-step
    #    reduction + 2-way parallel + ragged-tail masking path (small
    #    max_block_rows override keeps the test cheap).
    h2 = jnp.tanh(jax.random.normal(k3, (300, 256), jnp.float32))
    c2 = jnp.sign(jax.random.normal(k4, (300, 256), jnp.float32))
    loss2 = jax.block_until_ready(
        hash_center_loss(h2, c2, max_block_rows=256, num_parallel=2))
    assert jnp.allclose(loss2, ref_loss(h2, c2), rtol=1e-5, atol=1e-6), loss2

    # 3) Non-multiple-of-128 element count: exercises the minimal (<128 elem)
    #    lane-alignment pad plus in-kernel masking.
    h3 = jnp.tanh(jax.random.normal(k5, (601, 127), jnp.float32))
    c3 = jnp.sign(jax.random.normal(k6, (601, 127), jnp.float32))
    loss3 = jax.block_until_ready(
        hash_center_loss(h3, c3, max_block_rows=256, num_parallel=2))
    assert jnp.allclose(loss3, ref_loss(h3, c3), rtol=1e-5, atol=1e-6), loss3

    print("KERNEL_OK")
</pallas_src>

<mosaic_0001>
module attributes {stable_mosaic.version = 11 : i64} {
  func.func @kernel(%arg0: i32, %arg1: i32, %arg2: memref<32x128xf32, #tpu.memory_space<vmem>>, %arg3: memref<32x128xf32, #tpu.memory_space<vmem>>, %arg4: memref<1x1xf32, #tpu.memory_space<smem>>, %arg5: memref<32x128xf32, #tpu.memory_space<vmem>>) attributes {dimension_semantics = [#tpu.dimension_semantics<parallel>, #tpu.dimension_semantics<arbitrary>], iteration_bounds = array<i64: 1, 1>, scalar_prefetch = 0 : i64, scratch_operands = 1 : i64, tpu.core_type = #tpu.core_type<tc>, window_params = [{transform_indices = @transform_0, window_bounds = array<i64: 32, 128>}, {transform_indices = @transform_1, window_bounds = array<i64: 32, 128>}, {transform_indices = @transform_2, window_bounds = array<i64: 1, 1>}]} {
    %c0_i32 = arith.constant 0 : i32
    %0 = arith.cmpi eq, %arg1, %c0_i32 : i32
    %1 = arith.extui %0 : i1 to i32
    %c0_i32_0 = arith.constant 0 : i32
    %2 = arith.cmpi ne, %1, %c0_i32_0 : i32
    scf.if %2 {
      %cst_10 = arith.constant 0.000000e+00 : f32
      %15 = vector.broadcast %cst_10 : f32 to vector<32x128xf32>
      %c0_11 = arith.constant 0 : index
      %c0_12 = arith.constant 0 : index
      %16 = vector.load %arg5[%c0_11, %c0_12] : memref<32x128xf32, #tpu.memory_space<vmem>>, vector<32x128xf32>
      tpu.vector_store %arg5[%c0_11, %c0_12], %15 {strides = array<i32>} : memref<32x128xf32, #tpu.memory_space<vmem>>, vector<32x128xf32>,
    } else {
    }
    %c0 = arith.constant 0 : index
    %c0_1 = arith.constant 0 : index
    %3 = vector.load %arg2[%c0, %c0_1] : memref<32x128xf32, #tpu.memory_space<vmem>>, vector<32x128xf32>
    %c0_2 = arith.constant 0 : index
    %c0_3 = arith.constant 0 : index
    %4 = vector.load %arg3[%c0_2, %c0_3] : memref<32x128xf32, #tpu.memory_space<vmem>>, vector<32x128xf32>
    %5 = arith.subf %3, %4 : vector<32x128xf32>
    %6 = arith.mulf %5, %5 : vector<32x128xf32>
    %c0_4 = arith.constant 0 : index
    %c0_5 = arith.constant 0 : index
    %7 = vector.load %arg5[%c0_4, %c0_5] : memref<32x128xf32, #tpu.memory_space<vmem>>, vector<32x128xf32>
    %8 = vector.shape_cast %6 : vector<32x128xf32> to vector<1x32x128xf32>
    %cst = arith.constant dense<0.000000e+00> : vector<32x128xf32>
    %9 = vector.multi_reduction <add>, %8, %cst [0] : vector<1x32x128xf32> to vector<32x128xf32>
    %10 = arith.addf %7, %9 : vector<32x128xf32>
    %c0_6 = arith.constant 0 : index
    %c0_7 = arith.constant 0 : index
    %11 = vector.load %arg5[%c0_6, %c0_7] : memref<32x128xf32, #tpu.memory_space<vmem>>, vector<32x128xf32>
    tpu.vector_store %arg5[%c0_6, %c0_7], %10 {strides = array<i32>} : memref<32x128xf32, #tpu.memory_space<vmem>>, vector<32x128xf32>,
    %c0_i32_8 = arith.constant 0 : i32
    %12 = arith.cmpi eq, %arg1, %c0_i32_8 : i32
    %13 = arith.extui %12 : i1 to i32
    %c0_i32_9 = arith.constant 0 : i32
    %14 = arith.cmpi ne, %13, %c0_i32_9 : i32
    scf.if %14 {
      %c0_10 = arith.constant 0 : index
      %c0_11 = arith.constant 0 : index
      %15 = vector.load %arg5[%c0_10, %c0_11] : memref<32x128xf32, #tpu.memory_space<vmem>>, vector<32x128xf32>
      %16 = vector.shape_cast %15 : vector<32x128xf32> to vector<1x32x128xf32>
      %cst_12 = arith.constant dense<0.000000e+00> : vector<1xf32>
      %17 = vector.multi_reduction <add>, %16, %cst_12 [1, 2] : vector<1x32x128xf32> to vector<1xf32>
      %18 = vector.shape_cast %17 : vector<1xf32> to vector<1x1x1xf32>
      %19 = vector.extract %18[0, 0, 0] : f32 from vector<1x1x1xf32>
      %c0_13 = arith.constant 0 : index
      %c0_14 = arith.constant 0 : index
      %20 = memref.load %arg4[%c0_13, %c0_14] : memref<1x1xf32, #tpu.memory_space<smem>>
      memref.store %19, %arg4[%c0_13, %c0_14] : memref<1x1xf32, #tpu.memory_space<smem>>
    } else {
    }
    return
  }
  func.func @transform_0(%arg0: i32, %arg1: i32) -> (i32, i32) {
    %c1_i32 = arith.constant 1 : i32
    %0 = arith.muli %arg0, %c1_i32 : i32
    %1 = arith.addi %0, %arg1 : i32
    %c0_i32 = arith.constant 0 : i32
    %c0_i32_0 = arith.constant 0 : i32
    return %1, %c0_i32 : i32, i32
  }
  func.func @transform_1(%arg0: i32, %arg1: i32) -> (i32, i32) {
    %c1_i32 = arith.constant 1 : i32
    %0 = arith.muli %arg0, %c1_i32 : i32
    %1 = arith.addi %0, %arg1 : i32
    %c0_i32 = arith.constant 0 : i32
    %c0_i32_0 = arith.constant 0 : i32
    return %1, %c0_i32 : i32, i32
  }
  func.func @transform_2(%arg0: i32, %arg1: i32) -> (i32, i32) {
    %c0_i32 = arith.constant 0 : i32
    %c0_i32_0 = arith.constant 0 : i32
    return %arg0, %c0_i32 : i32, i32
  }
}

</mosaic_0001>

<llo_original>
// kernel: tpu_custom_call.1
$region0: #{tpu_custom_call.1}
  #allocation0 [shape = 'u32[]', space=smem, size = 0x4, offset = 0x4, fixed_abs, tag = 'smem constant byte address 0x4 - core index']
  #allocation1 [shape = 'u32[144,128]{1,0:T(1,128)}', space=vmem, size = 0x12000, scoped, tag = 'internal scratch']
  #allocation2 [shape = 'f32[32,128]{1,0:T(8,128)}', space=vmem, size = 0x4000, scoped, tag = 'scratch operand']
  %s0 = inlined_call_operand.hbm [shape: f32[32,128], index: 0, kind: input, shape index: {}]
  %s1 = inlined_call_operand.hbm [shape: f32[32,128], index: 1, kind: input, shape index: {}]
  %s2 = inlined_call_operand.hbm [shape: f32[1,1], index: 2, kind: output, shape index: {}]
  %s3 = sld [smem:[#allocation0]]
  $region34: #{tpu_custom_call.1} parent=0
    _
  %s5 = ssub.s32 1, %s3
  %s6 = scalar_select 0, %s5, %s3
  $region1: #{tpu_custom_call.1} parent=0
    #allocation3 [shape = 'u8[16384]{0}', space=vmem, size = 0x4000, scoped, tag = 'input window, operand 0, single buffered']
    #allocation4 [shape = 's32[1]{0}', space=sflag, size = 0x4, scoped, tag = 'scoped memory for tpu_custom_call.1']
    #allocation5 [shape = 's32[1]{0}', space=sflag, size = 0x4, scoped, tag = 'scoped memory for tpu_custom_call.1']
    #allocation6 [shape = 'u8[16384]{0}', space=vmem, size = 0x4000, scoped, tag = 'input window, operand 1, single buffered']
    #allocation7 [shape = 's32[1]{0}', space=sflag, size = 0x4, scoped, tag = 'scoped memory for tpu_custom_call.1']
    #allocation8 [shape = 'u8[512]{0}', space=smem, size = 0x200, scoped, tag = 'output window, operand 0, single buffered']
    %7 = vsyncpa [#allocation4], 0
    %8 = vsyncpa [#allocation7], 0
    %9 = vsyncpa [#allocation5], 0
    // Predicated region
    $region2: #{tpu_custom_call.1} parent=1 // pred_check
      _
    $region3: #{tpu_custom_call.1} parent=1 // pred_check_branch
      %11 = sbr.rel (0) target = $region5
    $region4: #{tpu_custom_call.1} parent=1 // pred_region
      %s12 = sadd.s32 0, 0
      %s13 = smul.u32 4, %s12
      %s15 = ssub.s32 512, 512
      %16 = vsyncadd [#allocation4], %s15
      %s17 = smul.addr %s13, 128
      %s18 = scalar_lea.hbm %s0, %s17
      %s19 = sshll.u32 [#allocation3], 4
      %s20 = int_to_ptr.vmem [resolvable:$true] %s19
      %25 = dma.hbm_to_vmem [thread:$0]  %s18, 512, %s20, [#allocation4], 128, 128, 8
    $region5: #{tpu_custom_call.1} parent=1 // pred_fallthru
      _
    // Predicated region
    $region6: #{tpu_custom_call.1} parent=1 // pred_check
      _
    $region7: #{tpu_custom_call.1} parent=1 // pred_check_branch
      %27 = sbr.rel (0) target = $region9
    $region8: #{tpu_custom_call.1} parent=1 // pred_region
      %s28 = sadd.s32 0, 0
      %s29 = smul.u32 4, %s28
      %s31 = ssub.s32 512, 512
      %32 = vsyncadd [#allocation7], %s31
      %s33 = smul.addr %s29, 128
      %s34 = scalar_lea.hbm %s1, %s33
      %s35 = sshll.u32 [#allocation6], 4
      %s36 = int_to_ptr.vmem [resolvable:$true] %s35
      %41 = dma.hbm_to_vmem [thread:$0]  %s34, 512, %s36, [#allocation7], 128, 128, 8
    $region9: #{tpu_custom_call.1} parent=1 // pred_fallthru
      _
    // Predicated region
    $region10: #{tpu_custom_call.1} parent=1 // pred_check
      _
    $region11: #{tpu_custom_call.1} parent=1 // pred_check_branch
      %43 = sbr.rel (0) target = $region13
    $region12: #{tpu_custom_call.1} parent=1 // pred_region
      %44 = dma.done [#allocation4], 512
    $region13: #{tpu_custom_call.1} parent=1 // pred_fallthru
      _
    // Predicated region
    $region14: #{tpu_custom_call.1} parent=1 // pred_check
      _
    $region15: #{tpu_custom_call.1} parent=1 // pred_check_branch
      %46 = sbr.rel (0) target = $region17
    $region16: #{tpu_custom_call.1} parent=1 // pred_region
      %47 = dma.done [#allocation7], 512
    $region17: #{tpu_custom_call.1} parent=1 // pred_fallthru
      _
    %s48 = sadd.s32 0, 0
    %s49 = smul.u32 4, %s48
    %s50 = sadd.s32 0, 0
    %s51 = smul.u32 4, %s50
    %p52 = scmp.eq.s32.totalorder 0, 0
    // Predicated region
    $region18: #{tpu_custom_call.1} parent=1 // pred_check
      %p53 = pneg %p52
    $region19: #{tpu_custom_call.1} parent=1 // pred_check_branch
      %55 = sbr.rel (%p53) target = $region21
    $region20: #{tpu_custom_call.1} parent=1 // pred_region
      %56 = vst [vmem:[#allocation2] sm:$0xff] 0.0
      %57 = vst [vmem:[#allocation2 + $0x8] sm:$0xff] 0.0
      %58 = vst [vmem:[#allocation2 + $0x10] sm:$0xff] 0.0
      %59 = vst [vmem:[#allocation2 + $0x18] sm:$0xff] 0.0
    $region21: #{tpu_custom_call.1} parent=1 // pred_fallthru
      _
    %v60 = vld [vmem:[#allocation3] sm:$0xff]
    %v61 = vld [vmem:[#allocation3 + $0x8] sm:$0xff]
    %v62 = vld [vmem:[#allocation3 + $0x10] sm:$0xff]
    %v63 = vld [vmem:[#allocation3 + $0x18] sm:$0xff]
    %v64 = vld [vmem:[#allocation6] sm:$0xff]
    %v65 = vld [vmem:[#allocation6 + $0x8] sm:$0xff]
    %v66 = vld [vmem:[#allocation6 + $0x10] sm:$0xff]
    %v67 = vld [vmem:[#allocation6 + $0x18] sm:$0xff]
    %v68 = vsub.f32 %v60, %v64
    %v69 = vsub.f32 %v61, %v65
    %v70 = vsub.f32 %v62, %v66
    %v71 = vsub.f32 %v63, %v67
    %v72 = vmul.f32 %v68, %v68
    %v73 = vmul.f32 %v69, %v69
    %v74 = vmul.f32 %v70, %v70
    %v75 = vmul.f32 %v71, %v71
    %v76 = vld [vmem:[#allocation2] sm:$0xff]
    %v77 = vld [vmem:[#allocation2 + $0x8] sm:$0xff]
    %v78 = vld [vmem:[#allocation2 + $0x10] sm:$0xff]
    %v79 = vld [vmem:[#allocation2 + $0x18] sm:$0xff]
    %v80 = vadd.f32 %v72, 0.0
    %v81 = vadd.f32 %v73, 0.0
    %v82 = vadd.f32 %v74, 0.0
    %v83 = vadd.f32 %v75, 0.0
    %v84 = vadd.f32 %v76, %v80
    %v85 = vadd.f32 %v77, %v81
    %v86 = vadd.f32 %v78, %v82
    %v87 = vadd.f32 %v79, %v83
    %88 = vst [vmem:[#allocation2] sm:$0xff] %v84
    %89 = vst [vmem:[#allocation2 + $0x8] sm:$0xff] %v85
    %90 = vst [vmem:[#allocation2 + $0x10] sm:$0xff] %v86
    %91 = vst [vmem:[#allocation2 + $0x18] sm:$0xff] %v87
    // Predicated region
    $region22: #{tpu_custom_call.1} parent=1 // pred_check
      %p92 = pneg %p52
    $region23: #{tpu_custom_call.1} parent=1 // pred_check_branch
      %94 = sbr.rel (%p92) target = $region25
    $region24: #{tpu_custom_call.1} parent=1 // pred_region
      %v95 = vld [vmem:[#allocation2] sm:$0xff]
      %v96 = vld [vmem:[#allocation2 + $0x8] sm:$0xff]
      %v97 = vld [vmem:[#allocation2 + $0x10] sm:$0xff]
      %v98 = vld [vmem:[#allocation2 + $0x18] sm:$0xff]
      %v99 = vadd.f32 %v95, %v96
      %v100 = vadd.f32 %v99, %v97
      %v101 = vadd.f32 %v100, %v98
      %102 = vadd.xlane.f32.xlu0 %v101
      %v103 = vpop.xlane.xlu0 %102
      %v104 = vrot.slane %v103, 4
      %v105 = vadd.f32 %v103, %v104
      %v106 = vrot.slane %v105, 2
      %v107 = vadd.f32 %v105, %v106
      %v108 = vrot.slane %v107, 1
      %v109 = vadd.f32 %v107, %v108
      %s110 = vtos %v109
      %s111 = scalar_lea.smem [#allocation8], 0
      %112 = sst [smem:[%s111]] %s110
    $region25: #{tpu_custom_call.1} parent=1 // pred_fallthru
      _
    // Predicated region
    $region26: #{tpu_custom_call.1} parent=1 // pred_check
      _
    $region27: #{tpu_custom_call.1} parent=1 // pred_check_branch
      %114 = sbr.rel (0) target = $region29
    $region28: #{tpu_custom_call.1} parent=1 // pred_region
      %s116 = ssub.s32 16, 16
      %117 = vsyncadd [#allocation5], %s116
      %120 = dma.smem_to_hbm [#allocation8], 16, %s2, [#allocation5]
    $region29: #{tpu_custom_call.1} parent=1 // pred_fallthru
      _
    // Predicated region
    $region30: #{tpu_custom_call.1} parent=1 // pred_check
      _
    $region31: #{tpu_custom_call.1} parent=1 // pred_check_branch
      %122 = sbr.rel (0) target = $region33
    $region32: #{tpu_custom_call.1} parent=1 // pred_region
      %123 = dma.done [#allocation5], 16
    $region33: #{tpu_custom_call.1} parent=1 // pred_fallthru
      _
    %124 = sfence
    %125 = vsyncpa [#allocation4], 1
    %126 = vsyncpa [#allocation7], 1
    %127 = vsyncpa [#allocation5], 1

</llo_original>
